<compile_context>
chip_gen: v7x
topology: tpu7x:2x2x1
jax: 0.10.0
libtpu: 0.0.40
codegen_flags: <defaults>
</compile_context>

<pallas_src>
import jax
import jax.numpy as jnp
from jax.experimental import pallas as pl
from jax.experimental.pallas import tpu as pltpu


def _residual_linear_kernel(x_ref, wt_ref, b_ref, o_ref):
    # x_ref : (tm, H)      wt_ref : (H, tn)   (pre-transposed weight: in x out)
    # b_ref : (1, tn) f32  o_ref  : (tm, tn)
    x = x_ref[...]
    # fn(x) = x @ W^T + b; wt is already W^T so this is a plain MXU matmul
    # with f32 accumulation (bf16 or f32 inputs).
    y = jnp.dot(x, wt_ref[...], preferred_element_type=jnp.float32)

    tn = o_ref.shape[-1]
    h = x_ref.shape[-1]
    if tn == h:
        # Common case (N untiled): the residual is the whole x block.
        x_res = x
    else:
        # N-tiled case: residual columns matching this output-feature tile.
        # tn % 128 == 0 is asserted in the wrapper, so the offset is
        # lane-aligned; hint the compiler with the lane width.
        off = pl.multiple_of(pl.program_id(1) * tn, 128)
        x_res = x_ref[:, pl.ds(off, tn)]

    # ResidualAdd semantics: fn(x) + x.  Bias + residual in f32, one downcast.
    o_ref[...] = (y + b_ref[...] + x_res.astype(jnp.float32)).astype(o_ref.dtype)


def _vmem_capacity_bytes():
    """Physical per-core VMEM; conservative fallback (v7x: 64 MiB) if unknown."""
    try:
        info = pltpu.get_tpu_info()
        for name in ("vmem_capacity_bytes", "vmem_size_bytes", "vmem_bytes"):
            cap = getattr(info, name, None)
            if cap:
                return int(cap)
    except Exception:
        pass
    return 64 * 1024 * 1024


def _select_tiles(R, H, x_itemsize, w_itemsize, out_itemsize, vmem_budget):
    """Pick (row_tile, n_tile) against the scoped-VMEM budget.

    Priorities for this memory-bound kernel:
      1. keep n_tile == H so the weight is fetched from HBM once and stays
         resident (single-buffered) for the whole grid;
      2. if N must be tiled, maximize row_tile — weight re-read traffic
         scales as (R / row_tile) · H²;
      3. respect the per-generation VMEM budget.
    """
    # Weight-tile cap ≈ 1/3 of the scoped budget (≈24 MiB v5e/v6e, ≈12 MiB v7x).
    w_cap = max(vmem_budget // 3, 4 * 1024 * 1024)

    def w_bytes(nt):
        bufs = 1 if nt == H else 2        # resident weight is single-buffered
        return bufs * H * nt * w_itemsize

    n_tile = H
    # Never shrink below 256 when H >= 256 (v6e/v7x MXU N-dim utilization).
    while w_bytes(n_tile) > w_cap and n_tile % 256 == 0 and n_tile > 256:
        n_tile //= 2

    def vmem_bytes(tm):
        wb_bufs = 1 if n_tile == H else 2
        return (2 * tm * H * x_itemsize              # x blocks (double-buffered)
                + 2 * tm * n_tile * out_itemsize     # out blocks (double-buffered)
                + w_bytes(n_tile)                    # weight tile(s)
                + wb_bufs * 8 * n_tile * 4)          # bias (f32, sublane-padded)

    # Row tile: 2048 target when N is tiled (cuts weight re-streaming), else 1024.
    row_tile = min(2048 if n_tile != H else 1024, R)
    while row_tile > 8 and vmem_bytes(row_tile) > vmem_budget:
        row_tile = max(8, row_tile // 2)
    if row_tile < R and row_tile % 8 != 0:
        # Tiny / ragged row counts: a single full-row block is always legal.
        row_tile = R
    return row_tile, n_tile


def _block_spec(shape, index_map, buffer_count=None):
    """BlockSpec with an optional explicit buffer count; falls back to the
    default spec if this jax build doesn't accept pipeline_mode."""
    if buffer_count is not None:
        try:
            return pl.BlockSpec(shape, index_map,
                                pipeline_mode=pl.Buffered(buffer_count))
        except TypeError:
            pass
    return pl.BlockSpec(shape, index_map)


def residual_add_linear(x, w, b, *, use_bf16=True, row_tile=None, n_tile=None,
                        vmem_limit_bytes=None):
    """Compute fn(x) + x with fn = Linear(H, H), fused in one Pallas kernel.

    x : (B, S, H)
    w : (H, H)  (out_features x in_features, PyTorch convention)
    b : (H,)
    """
    B, S, H = x.shape
    R = B * S
    out_dtype = x.dtype                       # module returns the input dtype

    x2d = x.reshape(R, H)
    # One-time transpose outside the kernel so the MXU contracts x's last dim
    # against the weight's leading dim directly (no in-kernel XLU transpose).
    wt = jnp.swapaxes(w, 0, 1)                # (in, out)
    if use_bf16 and x2d.dtype == jnp.float32:
        # Memory-bound: stream activations/weights as bf16, accumulate in f32.
        # (In a real pipeline the inputs would already arrive in bf16; the cast
        #  here is a one-off wrapper pass, not part of the kernel's HBM traffic.)
        x2d = x2d.astype(jnp.bfloat16)
        wt = wt.astype(jnp.bfloat16)
    b2d = b.reshape(1, H).astype(jnp.float32)  # epilogue stays in f32

    if vmem_limit_bytes is None:
        # ≈96 MiB scoped on 128-MiB chips (v5e/v6e), ≈48 MiB on v7x (64 MiB).
        vmem_limit_bytes = int(_vmem_capacity_bytes() * 3) // 4
    tile_budget = (vmem_limit_bytes * 3) // 4   # headroom for Mosaic scratch

    auto_rt, auto_nt = _select_tiles(
        R, H, x2d.dtype.itemsize, wt.dtype.itemsize,
        jnp.dtype(out_dtype).itemsize, tile_budget)
    if row_tile is None:
        row_tile = auto_rt
    if n_tile is None:
        n_tile = auto_nt
    assert H % n_tile == 0 and (n_tile == H or n_tile % 128 == 0)

    grid = (pl.cdiv(R, row_tile), H // n_tile)

    def _call(single_buffer_resident):
        # Constant-block-index (resident) weight/bias don't need a double buffer.
        wb_bufs = 1 if (single_buffer_resident and n_tile == H) else None
        return pl.pallas_call(
            _residual_linear_kernel,
            out_shape=jax.ShapeDtypeStruct((R, H), out_dtype),
            grid=grid,
            in_specs=[
                # x rows: streamed on the row axis, resident across the n axis.
                pl.BlockSpec((row_tile, H), lambda i, n: (i, 0)),
                # pre-transposed weight: tiled on output features only.
                _block_spec((H, n_tile), lambda i, n: (0, n), wb_bufs),
                # bias: tiled on output features.
                _block_spec((1, n_tile), lambda i, n: (0, n), wb_bufs),
            ],
            out_specs=pl.BlockSpec((row_tile, n_tile), lambda i, n: (i, n)),
            compiler_params=pltpu.CompilerParams(
                # Megacore (v7x) shards the ROW axis only — sharding n would
                # duplicate x HBM reads across the two TensorCores.
                dimension_semantics=("parallel", "arbitrary"),
                vmem_limit_bytes=vmem_limit_bytes,
            ),
        )(x2d, wt, b2d)

    if n_tile == H:
        try:
            out2d = _call(True)
        except Exception:
            # pl.Buffered(1) not supported by this build — default buffering.
            out2d = _call(False)
    else:
        out2d = _call(False)

    return out2d.reshape(B, S, H)


# TODO(synk): ResidualAdd wraps an arbitrary `fn`; only fn = Linear(H, H) is
# fused here. Other `fn`s would need their own fused kernels (or fall back to
# plain JAX for fn plus an elementwise-add kernel).


if __name__ == "__main__":
    def ref_fn(x, w, b):
        return jnp.einsum("bsh,oh->bso", x, w) + b + x

    key = jax.random.PRNGKey(0)

    # Cases exercise: (1) default bf16 path, (2) exact f32 path, (3) row-tiled
    # grid (>1 row step), (4) ragged row count with a partial last row tile,
    # (5) N-tiled residual-slice branch of the kernel.
    cases = [
        dict(shape=(2, 8, 128),  use_bf16=True,  row_tile=None, n_tile=None,
             atol=5e-2, rtol=2e-2),
        dict(shape=(2, 8, 128),  use_bf16=False, row_tile=None, n_tile=None,
             atol=1e-3, rtol=1e-3),
        dict(shape=(4, 256, 128), use_bf16=True, row_tile=256,  n_tile=None,
             atol=5e-2, rtol=2e-2),
        dict(shape=(3, 100, 128), use_bf16=False, row_tile=128, n_tile=None,
             atol=1e-3, rtol=1e-3),
        dict(shape=(2, 64, 256), use_bf16=False, row_tile=None, n_tile=128,
             atol=1e-3, rtol=1e-3),
    ]
    for c in cases:
        B, S, H = c["shape"]
        kx, kw, kb = jax.random.split(jax.random.fold_in(key, B * 10000 + S), 3)
        x = jax.random.normal(kx, (B, S, H), dtype=jnp.float32)
        # Deterministic parameter init for the wrapped fn (Linear(H, H)).
        w = jax.random.normal(kw, (H, H), dtype=jnp.float32) / jnp.sqrt(H)
        b = jax.random.normal(kb, (H,), dtype=jnp.float32) * 0.01

        out = jax.block_until_ready(
            residual_add_linear(x, w, b, use_bf16=c["use_bf16"],
                                row_tile=c["row_tile"], n_tile=c["n_tile"]))
        ref = ref_fn(x, w, b)
        assert out.shape == (B, S, H)
        assert jnp.allclose(out, ref, atol=c["atol"], rtol=c["rtol"]), (
            f"mismatch vs reference for case {c}")

    print("KERNEL_OK")
</pallas_src>

<mosaic_0001>
module attributes {stable_mosaic.version = 11 : i64} {
  func.func @_residual_linear_kernel(%arg0: i32, %arg1: i32, %arg2: memref<16x128xbf16, #tpu.memory_space<vmem>>, %arg3: memref<128x128xbf16, #tpu.memory_space<vmem>>, %arg4: memref<1x128xf32, #tpu.memory_space<vmem>>, %arg5: memref<16x128xf32, #tpu.memory_space<vmem>>) attributes {dimension_semantics = [#tpu.dimension_semantics<parallel>, #tpu.dimension_semantics<arbitrary>], iteration_bounds = array<i64: 1, 1>, scalar_prefetch = 0 : i64, scratch_operands = 0 : i64, tpu.core_type = #tpu.core_type<tc>, window_params = [{transform_indices = @transform_0, window_bounds = array<i64: 16, 128>}, {pipeline_mode = #tpu.pipeline_mode<synchronous>, transform_indices = @transform_1, window_bounds = array<i64: 128, 128>}, {pipeline_mode = #tpu.pipeline_mode<synchronous>, transform_indices = @transform_2, window_bounds = array<i64: 1, 128>}, {transform_indices = @transform_3, window_bounds = array<i64: 16, 128>}]} {
    %c0 = arith.constant 0 : index
    %c0_0 = arith.constant 0 : index
    %0 = vector.load %arg2[%c0, %c0_0] : memref<16x128xbf16, #tpu.memory_space<vmem>>, vector<16x128xbf16>
    %c0_1 = arith.constant 0 : index
    %c0_2 = arith.constant 0 : index
    %1 = vector.load %arg3[%c0_1, %c0_2] : memref<128x128xbf16, #tpu.memory_space<vmem>>, vector<128x128xbf16>
    %cst = arith.constant dense<0.000000e+00> : vector<16x128xf32>
    %2 = tpu.matmul %0, %1, %cst {dimension_numbers = #tpu.dot_dimension_numbers<[1], [0], [0], [1], [0, 0, 1, 1], [], []>} : vector<16x128xbf16>, vector<128x128xbf16>, vector<16x128xf32> -> vector<16x128xf32>
    %c0_3 = arith.constant 0 : index
    %c0_4 = arith.constant 0 : index
    %3 = vector.load %arg4[%c0_3, %c0_4] : memref<1x128xf32, #tpu.memory_space<vmem>>, vector<1x128xf32>
    %4 = vector.broadcast %3 : vector<1x128xf32> to vector<16x128xf32>
    %5 = arith.addf %2, %4 : vector<16x128xf32>
    %6 = arith.extf %0 : vector<16x128xbf16> to vector<16x128xf32>
    %7 = arith.addf %5, %6 : vector<16x128xf32>
    %c0_5 = arith.constant 0 : index
    %c0_6 = arith.constant 0 : index
    %8 = vector.load %arg5[%c0_5, %c0_6] : memref<16x128xf32, #tpu.memory_space<vmem>>, vector<16x128xf32>
    tpu.vector_store %arg5[%c0_5, %c0_6], %7 {strides = array<i32>} : memref<16x128xf32, #tpu.memory_space<vmem>>, vector<16x128xf32>,
    return
  }
  func.func @transform_0(%arg0: i32, %arg1: i32) -> (i32, i32) {
    %c0_i32 = arith.constant 0 : i32
    %c0_i32_0 = arith.constant 0 : i32
    return %arg0, %c0_i32 : i32, i32
  }
  func.func @transform_1(%arg0: i32, %arg1: i32) -> (i32, i32) {
    %c0_i32 = arith.constant 0 : i32
    %c0_i32_0 = arith.constant 0 : i32
    return %c0_i32, %arg1 : i32, i32
  }
  func.func @transform_2(%arg0: i32, %arg1: i32) -> (i32, i32) {
    %c0_i32 = arith.constant 0 : i32
    %c0_i32_0 = arith.constant 0 : i32
    return %c0_i32, %arg1 : i32, i32
  }
  func.func @transform_3(%arg0: i32, %arg1: i32) -> (i32, i32) {
    %c0_i32 = arith.constant 0 : i32
    return %arg0, %arg1 : i32, i32
  }
}

module attributes {stable_mosaic.version = 11 : i64} {
  func.func @_residual_linear_kernel(%arg0: i32, %arg1: i32, %arg2: memref<16x128xbf16, #tpu.memory_space<vmem>>, %arg3: memref<128x128xbf16, #tpu.memory_space<vmem>>, %arg4: memref<1x128xf32, #tpu.memory_space<vmem>>, %arg5: memref<16x128xf32, #tpu.memory_space<vmem>>) attributes {dimension_semantics = [#tpu.dimension_semantics<parallel>, #tpu.dimension_semantics<arbitrary>], iteration_bounds = array<i64: 1, 1>, scalar_prefetch = 0 : i64, scratch_operands = 0 : i64, tpu.core_type = #tpu.core_type<tc>, window_params = [{transform_indices = @transform_0, window_bounds = array<i64: 16, 128>}, {transform_indices = @transform_1, window_bounds = array<i64: 128, 128>}, {transform_indices = @transform_2, window_bounds = array<i64: 1, 128>}, {transform_indices = @transform_3, window_bounds = array<i64: 16, 128>}]} {
    %c0 = arith.constant 0 : index
    %c0_0 = arith.constant 0 : index
    %0 = vector.load %arg2[%c0, %c0_0] : memref<16x128xbf16, #tpu.memory_space<vmem>>, vector<16x128xbf16>
    %c0_1 = arith.constant 0 : index
    %c0_2 = arith.constant 0 : index
    %1 = vector.load %arg3[%c0_1, %c0_2] : memref<128x128xbf16, #tpu.memory_space<vmem>>, vector<128x128xbf16>
    %cst = arith.constant dense<0.000000e+00> : vector<16x128xf32>
    %2 = tpu.matmul %0, %1, %cst {dimension_numbers = #tpu.dot_dimension_numbers<[1], [0], [0], [1], [0, 0, 1, 1], [], []>} : vector<16x128xbf16>, vector<128x128xbf16>, vector<16x128xf32> -> vector<16x128xf32>
    %c0_3 = arith.constant 0 : index
    %c0_4 = arith.constant 0 : index
    %3 = vector.load %arg4[%c0_3, %c0_4] : memref<1x128xf32, #tpu.memory_space<vmem>>, vector<1x128xf32>
    %4 = vector.broadcast %3 : vector<1x128xf32> to vector<16x128xf32>
    %5 = arith.addf %2, %4 : vector<16x128xf32>
    %6 = arith.extf %0 : vector<16x128xbf16> to vector<16x128xf32>
    %7 = arith.addf %5, %6 : vector<16x128xf32>
    %c0_5 = arith.constant 0 : index
    %c0_6 = arith.constant 0 : index
    %8 = vector.load %arg5[%c0_5, %c0_6] : memref<16x128xf32, #tpu.memory_space<vmem>>, vector<16x128xf32>
    tpu.vector_store %arg5[%c0_5, %c0_6], %7 {strides = array<i32>} : memref<16x128xf32, #tpu.memory_space<vmem>>, vector<16x128xf32>,
    return
  }
  func.func @transform_0(%arg0: i32, %arg1: i32) -> (i32, i32) {
    %c0_i32 = arith.constant 0 : i32
    %c0_i32_0 = arith.constant 0 : i32
    return %arg0, %c0_i32 : i32, i32
  }
  func.func @transform_1(%arg0: i32, %arg1: i32) -> (i32, i32) {
    %c0_i32 = arith.constant 0 : i32
    %c0_i32_0 = arith.constant 0 : i32
    return %c0_i32, %arg1 : i32, i32
  }
  func.func @transform_2(%arg0: i32, %arg1: i32) -> (i32, i32) {
    %c0_i32 = arith.constant 0 : i32
    %c0_i32_0 = arith.constant 0 : i32
    return %c0_i32, %arg1 : i32, i32
  }
  func.func @transform_3(%arg0: i32, %arg1: i32) -> (i32, i32) {
    %c0_i32 = arith.constant 0 : i32
    return %arg0, %arg1 : i32, i32
  }
}

</mosaic_0001>

<llo_original>
// kernel: tpu_custom_call.1
$region0: #{tpu_custom_call.1}
  #allocation0 [shape = 'u32[]', space=smem, size = 0x4, offset = 0x4, fixed_abs, tag = 'smem constant byte address 0x4 - core index']
  #allocation1 [shape = 'u32[144,128]{1,0:T(1,128)}', space=vmem, size = 0x12000, scoped, tag = 'internal scratch']
  %s0 = inlined_call_operand.hbm [shape: bf16[16,128], index: 0, kind: input, shape index: {}]
  %s1 = inlined_call_operand.hbm [shape: bf16[128,128], index: 1, kind: input, shape index: {}]
  %s2 = inlined_call_operand.vmem [shape: f32[1,128], index: 2, kind: input, shape index: {}]
  %s3 = inlined_call_operand.hbm [shape: f32[16,128], index: 3, kind: output, shape index: {}]
  %s4 = sld [smem:[#allocation0]]
  $region30: #{tpu_custom_call.1} parent=0
    _
  %s6 = ssub.s32 1, %s4
  %s7 = scalar_select 0, %s6, %s4
  $region1: #{tpu_custom_call.1} parent=0
    #allocation2 [shape = 'u8[4096]{0}', space=vmem, size = 0x1000, scoped, tag = 'input window, operand 0, single buffered']
    #allocation3 [shape = 's32[1]{0}', space=sflag, size = 0x4, scoped, tag = 'scoped memory for tpu_custom_call.1']
    #allocation4 [shape = 's32[1]{0}', space=sflag, size = 0x4, scoped, tag = 'scoped memory for tpu_custom_call.1']
    #allocation5 [shape = 'u8[32768]{0}', space=vmem, size = 0x8000, scoped, tag = 'input window, operand 1, single buffered']
    #allocation6 [shape = 's32[1]{0}', space=sflag, size = 0x4, scoped, tag = 'scoped memory for tpu_custom_call.1']
    #allocation7 [shape = 'u8[8192]{0}', space=vmem, size = 0x2000, scoped, tag = 'output window, operand 0, single buffered']
    %8 = vsyncpa [#allocation3], 0
    %9 = vsyncpa [#allocation6], 0
    %10 = vsyncpa [#allocation4], 0
    // Predicated region
    $region2: #{tpu_custom_call.1} parent=1 // pred_check
      _
    $region3: #{tpu_custom_call.1} parent=1 // pred_check_branch
      %12 = sbr.rel (0) target = $region5
    $region4: #{tpu_custom_call.1} parent=1 // pred_region
      %s14 = ssub.s32 128, 128
      %15 = vsyncadd [#allocation3], %s14
      %s16 = sshll.u32 [#allocation2], 4
      %s17 = int_to_ptr.vmem [resolvable:$true] %s16
      %22 = dma.hbm_to_vmem [thread:$0]  %s0, 128, %s17, [#allocation3], 64, 64, 4
    $region5: #{tpu_custom_call.1} parent=1 // pred_fallthru
      _
    // Predicated region
    $region6: #{tpu_custom_call.1} parent=1 // pred_check
      _
    $region7: #{tpu_custom_call.1} parent=1 // pred_check_branch
      %24 = sbr.rel (0) target = $region9
    $region8: #{tpu_custom_call.1} parent=1 // pred_region
      %s26 = ssub.s32 1024, 1024
      %27 = vsyncadd [#allocation6], %s26
      %s28 = sshll.u32 [#allocation5], 4
      %s29 = int_to_ptr.vmem [resolvable:$true] %s28
      %34 = dma.hbm_to_vmem [thread:$0]  %s1, 1024, %s29, [#allocation6], 64, 64, 4
    $region9: #{tpu_custom_call.1} parent=1 // pred_fallthru
      _
    // Predicated region
    $region10: #{tpu_custom_call.1} parent=1 // pred_check
      _
    $region11: #{tpu_custom_call.1} parent=1 // pred_check_branch
      %36 = sbr.rel (0) target = $region13
    $region12: #{tpu_custom_call.1} parent=1 // pred_region
      _
    $region13: #{tpu_custom_call.1} parent=1 // pred_fallthru
      _
    // Predicated region
    $region14: #{tpu_custom_call.1} parent=1 // pred_check
      _
    $region15: #{tpu_custom_call.1} parent=1 // pred_check_branch
      %38 = sbr.rel (0) target = $region17
    $region16: #{tpu_custom_call.1} parent=1 // pred_region
      %39 = dma.done [#allocation3], 128
    $region17: #{tpu_custom_call.1} parent=1 // pred_fallthru
      _
    // Predicated region
    $region18: #{tpu_custom_call.1} parent=1 // pred_check
      _
    $region19: #{tpu_custom_call.1} parent=1 // pred_check_branch
      %41 = sbr.rel (0) target = $region21
    $region20: #{tpu_custom_call.1} parent=1 // pred_region
      %42 = dma.done [#allocation6], 1024
    $region21: #{tpu_custom_call.1} parent=1 // pred_fallthru
      _
    %v44 = vld [vmem:[#allocation2] sm:$0xf]
    %v45 = vld [vmem:[#allocation2 + $0x4] sm:$0xf]
    %v46 = vld [vmem:[#allocation5] sm:$0xf]
    %v47 = vld [vmem:[#allocation5 + $0x4] sm:$0xf]
    %v48 = vld [vmem:[#allocation5 + $0x8] sm:$0xf]
    %v49 = vld [vmem:[#allocation5 + $0xc] sm:$0xf]
    %v50 = vld [vmem:[#allocation5 + $0x10] sm:$0xf]
    %v51 = vld [vmem:[#allocation5 + $0x14] sm:$0xf]
    %v52 = vld [vmem:[#allocation5 + $0x18] sm:$0xf]
    %v53 = vld [vmem:[#allocation5 + $0x1c] sm:$0xf]
    %v54 = vld [vmem:[#allocation5 + $0x20] sm:$0xf]
    %v55 = vld [vmem:[#allocation5 + $0x24] sm:$0xf]
    %v56 = vld [vmem:[#allocation5 + $0x28] sm:$0xf]
    %v57 = vld [vmem:[#allocation5 + $0x2c] sm:$0xf]
    %v58 = vld [vmem:[#allocation5 + $0x30] sm:$0xf]
    %v59 = vld [vmem:[#allocation5 + $0x34] sm:$0xf]
    %v60 = vld [vmem:[#allocation5 + $0x38] sm:$0xf]
    %v61 = vld [vmem:[#allocation5 + $0x3c] sm:$0xf]
    %v62 = vld [vmem:[%s2] sm:$0x1]
    %v64 = vlaneseq
    %v65 = vshrl.u32 %v64, 7
    %v66 = vsub.s32 0, %v65
    %v67 = vrot.slane %v62, %v66
    %v71 = vunpack.c.l.b16 %v44
    %v72 = vunpack.c.l.b16 %v45
    %v73 = vpack.c.b16 %v72, %v71
    %v91 = vunpack.c.l.b16 %v46
    %v92 = vunpack.c.l.b16 %v47
    %v93 = vunpack.c.l.b16 %v48
    %v94 = vunpack.c.l.b16 %v49
    %v95 = vunpack.c.l.b16 %v50
    %v96 = vunpack.c.l.b16 %v51
    %v97 = vunpack.c.l.b16 %v52
    %v98 = vunpack.c.l.b16 %v53
    %v99 = vunpack.c.l.b16 %v54
    %v100 = vunpack.c.l.b16 %v55
    %v101 = vunpack.c.l.b16 %v56
    %v102 = vunpack.c.l.b16 %v57
    %v103 = vunpack.c.l.b16 %v58
    %v104 = vunpack.c.l.b16 %v59
    %v105 = vunpack.c.l.b16 %v60
    %v106 = vunpack.c.l.b16 %v61
    %v107 = vpack.c.b16 %v92, %v91
    %v108 = vpack.c.b16 %v94, %v93
    %v109 = vpack.c.b16 %v96, %v95
    %v110 = vpack.c.b16 %v98, %v97
    %v111 = vpack.c.b16 %v100, %v99
    %v112 = vpack.c.b16 %v102, %v101
    %v113 = vpack.c.b16 %v104, %v103
    %v114 = vpack.c.b16 %v106, %v105
    %123 = vmatprep.subr.bf16.mxu0 0
    %124 = vmatpush1.bf16.msra.mxu0 %v107
    %125 = vmatprep.subr.bf16.mxu0 0
    %126 = vmatpush1.bf16.msra.mxu0 %v108
    %127 = vmatprep.subr.bf16.mxu0 0
    %128 = vmatpush1.bf16.msra.mxu0 %v109
    %129 = vmatprep.subr.bf16.mxu0 0
    %130 = vmatpush1.bf16.msra.mxu0 %v110
    %131 = vmatprep.subr.bf16.mxu0 0
    %132 = vmatpush1.bf16.msra.mxu0 %v111
    %133 = vmatprep.subr.bf16.mxu0 0
    %134 = vmatpush1.bf16.msra.mxu0 %v112
    %135 = vmatprep.subr.bf16.mxu0 0
    %136 = vmatpush1.bf16.msra.mxu0 %v113
    %137 = vmatprep.subr.bf16.mxu0 0
    %138 = vmatpush1.bf16.msra.mxu0 %v114
    %139 = vmatprep.subr.bf16.mxu0 0
    %140 = vmatpush1.bf16.msra.mxu0 0
    %141 = vmatprep.subr.bf16.mxu0 0
    %142 = vmatpush1.bf16.msra.mxu0 0
    %143 = vmatprep.subr.bf16.mxu0 0
    %144 = vmatpush1.bf16.msra.mxu0 0
    %145 = vmatprep.subr.bf16.mxu0 0
    %146 = vmatpush1.bf16.msra.mxu0 0
    %147 = vmatprep.subr.bf16.mxu0 0
    %148 = vmatpush1.bf16.msra.mxu0 0
    %149 = vmatprep.subr.bf16.mxu0 0
    %150 = vmatpush1.bf16.msra.mxu0 0
    %151 = vmatprep.subr.bf16.mxu0 0
    %152 = vmatpush1.bf16.msra.mxu0 0
    %153 = vmatprep.subr.bf16.mxu0 0
    %154 = vmatpush1.bf16.msra.mxu0 0
    %155 = vmatprep.mubr.bf16.mxu0 0
    %156 = vmatmul.mubr.bf16.gmra.mrb[0].mxu0 %v73
    %v157 = vpop.f32.mrb[0].mxu0
    %v158 = vadd.f32 %v67, %v157
    %v159 = vpop.f32.mrb[0].mxu0
    %v160 = vpop.f32.mrb[0].mxu0
    %v161 = vadd.f32 %v67, %v160
    %v162 = vpop.f32.mrb[0].mxu0
    %163 = vdwg.mxu0
    %v164 = vunpack.c.l.bf16 %v44
    %v165 = vunpack.c.l.bf16 %v45
    %v166 = vadd.f32 %v158, %v164
    %v167 = vadd.f32 %v161, %v165
    %168 = vst [vmem:[#allocation7] sm:$0xff] %v166
    %169 = vst [vmem:[#allocation7 + $0x8] sm:$0xff] %v167
    // Predicated region
    $region22: #{tpu_custom_call.1} parent=1 // pred_check
      _
    $region23: #{tpu_custom_call.1} parent=1 // pred_check_branch
      %171 = sbr.rel (0) target = $region25
    $region24: #{tpu_custom_call.1} parent=1 // pred_region
      %s173 = ssub.s32 256, 256
      %174 = vsyncadd [#allocation4], %s173
      %s175 = sshll.u32 [#allocation7], 4
      %s176 = int_to_ptr.vmem [resolvable:$true] %s175
      %181 = dma.vmem_to_hbm [thread:$0]  %s176, 256, %s3, [#allocation4], 128, 128, 8
    $region25: #{tpu_custom_call.1} parent=1 // pred_fallthru
      _
    // Predicated region
    $region26: #{tpu_custom_call.1} parent=1 // pred_check
      _
    $region27: #{tpu_custom_call.1} parent=1 // pred_check_branch
      %183 = sbr.rel (0) target = $region29
    $region28: #{tpu_custom_call.1} parent=1 // pred_region
      %184 = dma.done [#allocation4], 256
    $region29: #{tpu_custom_call.1} parent=1 // pred_fallthru
      _
    %185 = vsyncpa [#allocation3], 1
    %186 = vsyncpa [#allocation6], 1
    %187 = vsyncpa [#allocation4], 1

// kernel: tpu_custom_call.1
$region0: #{tpu_custom_call.1}
  #allocation0 [shape = 'u32[]', space=smem, size = 0x4, offset = 0x4, fixed_abs, tag = 'smem constant byte address 0x4 - core index']
  #allocation1 [shape = 'u32[144,128]{1,0:T(1,128)}', space=vmem, size = 0x12000, scoped, tag = 'internal scratch']
  %s0 = inlined_call_operand.hbm [shape: bf16[16,128], index: 0, kind: input, shape index: {}]
  %s1 = inlined_call_operand.hbm [shape: bf16[128,128], index: 1, kind: input, shape index: {}]
  %s2 = inlined_call_operand.vmem [shape: f32[1,128], index: 2, kind: input, shape index: {}]
  %s3 = inlined_call_operand.hbm [shape: f32[16,128], index: 3, kind: output, shape index: {}]
  %s4 = sld [smem:[#allocation0]]
  $region30: #{tpu_custom_call.1} parent=0
    _
  %s6 = ssub.s32 1, %s4
  %s7 = scalar_select 0, %s6, %s4
  $region1: #{tpu_custom_call.1} parent=0
    #allocation2 [shape = 'u8[4096]{0}', space=vmem, size = 0x1000, scoped, tag = 'input window, operand 0, single buffered']
    #allocation3 [shape = 's32[1]{0}', space=sflag, size = 0x4, scoped, tag = 'scoped memory for tpu_custom_call.1']
    #allocation4 [shape = 's32[1]{0}', space=sflag, size = 0x4, scoped, tag = 'scoped memory for tpu_custom_call.1']
    #allocation5 [shape = 'u8[32768]{0}', space=vmem, size = 0x8000, scoped, tag = 'input window, operand 1, single buffered']
    #allocation6 [shape = 's32[1]{0}', space=sflag, size = 0x4, scoped, tag = 'scoped memory for tpu_custom_call.1']
    #allocation7 [shape = 'u8[8192]{0}', space=vmem, size = 0x2000, scoped, tag = 'output window, operand 0, single buffered']
    %8 = vsyncpa [#allocation3], 0
    %9 = vsyncpa [#allocation6], 0
    %10 = vsyncpa [#allocation4], 0
    // Predicated region
    $region2: #{tpu_custom_call.1} parent=1 // pred_check
      _
    $region3: #{tpu_custom_call.1} parent=1 // pred_check_branch
      %12 = sbr.rel (0) target = $region5
    $region4: #{tpu_custom_call.1} parent=1 // pred_region
      %s14 = ssub.s32 128, 128
      %15 = vsyncadd [#allocation3], %s14
      %s16 = sshll.u32 [#allocation2], 4
      %s17 = int_to_ptr.vmem [resolvable:$true] %s16
      %22 = dma.hbm_to_vmem [thread:$0]  %s0, 128, %s17, [#allocation3], 64, 64, 4
    $region5: #{tpu_custom_call.1} parent=1 // pred_fallthru
      _
    // Predicated region
    $region6: #{tpu_custom_call.1} parent=1 // pred_check
      _
    $region7: #{tpu_custom_call.1} parent=1 // pred_check_branch
      %24 = sbr.rel (0) target = $region9
    $region8: #{tpu_custom_call.1} parent=1 // pred_region
      %s26 = ssub.s32 1024, 1024
      %27 = vsyncadd [#allocation6], %s26
      %s28 = sshll.u32 [#allocation5], 4
      %s29 = int_to_ptr.vmem [resolvable:$true] %s28
      %34 = dma.hbm_to_vmem [thread:$0]  %s1, 1024, %s29, [#allocation6], 64, 64, 4
    $region9: #{tpu_custom_call.1} parent=1 // pred_fallthru
      _
    // Predicated region
    $region10: #{tpu_custom_call.1} parent=1 // pred_check
      _
    $region11: #{tpu_custom_call.1} parent=1 // pred_check_branch
      %36 = sbr.rel (0) target = $region13
    $region12: #{tpu_custom_call.1} parent=1 // pred_region
      _
    $region13: #{tpu_custom_call.1} parent=1 // pred_fallthru
      _
    // Predicated region
    $region14: #{tpu_custom_call.1} parent=1 // pred_check
      _
    $region15: #{tpu_custom_call.1} parent=1 // pred_check_branch
      %38 = sbr.rel (0) target = $region17
    $region16: #{tpu_custom_call.1} parent=1 // pred_region
      %39 = dma.done [#allocation3], 128
    $region17: #{tpu_custom_call.1} parent=1 // pred_fallthru
      _
    // Predicated region
    $region18: #{tpu_custom_call.1} parent=1 // pred_check
      _
    $region19: #{tpu_custom_call.1} parent=1 // pred_check_branch
      %41 = sbr.rel (0) target = $region21
    $region20: #{tpu_custom_call.1} parent=1 // pred_region
      %42 = dma.done [#allocation6], 1024
    $region21: #{tpu_custom_call.1} parent=1 // pred_fallthru
      _
    %v44 = vld [vmem:[#allocation2] sm:$0xf]
    %v45 = vld [vmem:[#allocation2 + $0x4] sm:$0xf]
    %v46 = vld [vmem:[#allocation5] sm:$0xf]
    %v47 = vld [vmem:[#allocation5 + $0x4] sm:$0xf]
    %v48 = vld [vmem:[#allocation5 + $0x8] sm:$0xf]
    %v49 = vld [vmem:[#allocation5 + $0xc] sm:$0xf]
    %v50 = vld [vmem:[#allocation5 + $0x10] sm:$0xf]
    %v51 = vld [vmem:[#allocation5 + $0x14] sm:$0xf]
    %v52 = vld [vmem:[#allocation5 + $0x18] sm:$0xf]
    %v53 = vld [vmem:[#allocation5 + $0x1c] sm:$0xf]
    %v54 = vld [vmem:[#allocation5 + $0x20] sm:$0xf]
    %v55 = vld [vmem:[#allocation5 + $0x24] sm:$0xf]
    %v56 = vld [vmem:[#allocation5 + $0x28] sm:$0xf]
    %v57 = vld [vmem:[#allocation5 + $0x2c] sm:$0xf]
    %v58 = vld [vmem:[#allocation5 + $0x30] sm:$0xf]
    %v59 = vld [vmem:[#allocation5 + $0x34] sm:$0xf]
    %v60 = vld [vmem:[#allocation5 + $0x38] sm:$0xf]
    %v61 = vld [vmem:[#allocation5 + $0x3c] sm:$0xf]
    %v62 = vld [vmem:[%s2] sm:$0x1]
    %v64 = vlaneseq
    %v65 = vshrl.u32 %v64, 7
    %v66 = vsub.s32 0, %v65
    %v67 = vrot.slane %v62, %v66
    %v71 = vunpack.c.l.b16 %v44
    %v72 = vunpack.c.l.b16 %v45
    %v73 = vpack.c.b16 %v72, %v71
    %v91 = vunpack.c.l.b16 %v46
    %v92 = vunpack.c.l.b16 %v47
    %v93 = vunpack.c.l.b16 %v48
    %v94 = vunpack.c.l.b16 %v49
    %v95 = vunpack.c.l.b16 %v50
    %v96 = vunpack.c.l.b16 %v51
    %v97 = vunpack.c.l.b16 %v52
    %v98 = vunpack.c.l.b16 %v53
    %v99 = vunpack.c.l.b16 %v54
    %v100 = vunpack.c.l.b16 %v55
    %v101 = vunpack.c.l.b16 %v56
    %v102 = vunpack.c.l.b16 %v57
    %v103 = vunpack.c.l.b16 %v58
    %v104 = vunpack.c.l.b16 %v59
    %v105 = vunpack.c.l.b16 %v60
    %v106 = vunpack.c.l.b16 %v61
    %v107 = vpack.c.b16 %v92, %v91
    %v108 = vpack.c.b16 %v94, %v93
    %v109 = vpack.c.b16 %v96, %v95
    %v110 = vpack.c.b16 %v98, %v97
    %v111 = vpack.c.b16 %v100, %v99
    %v112 = vpack.c.b16 %v102, %v101
    %v113 = vpack.c.b16 %v104, %v103
    %v114 = vpack.c.b16 %v106, %v105
    %123 = vmatprep.subr.bf16.mxu0 0
    %124 = vmatpush1.bf16.msra.mxu0 %v107
    %125 = vmatprep.subr.bf16.mxu0 0
    %126 = vmatpush1.bf16.msra.mxu0 %v108
    %127 = vmatprep.subr.bf16.mxu0 0
    %128 = vmatpush1.bf16.msra.mxu0 %v109
    %129 = vmatprep.subr.bf16.mxu0 0
    %130 = vmatpush1.bf16.msra.mxu0 %v110
    %131 = vmatprep.subr.bf16.mxu0 0
    %132 = vmatpush1.bf16.msra.mxu0 %v111
    %133 = vmatprep.subr.bf16.mxu0 0
    %134 = vmatpush1.bf16.msra.mxu0 %v112
    %135 = vmatprep.subr.bf16.mxu0 0
    %136 = vmatpush1.bf16.msra.mxu0 %v113
    %137 = vmatprep.subr.bf16.mxu0 0
    %138 = vmatpush1.bf16.msra.mxu0 %v114
    %139 = vmatprep.subr.bf16.mxu0 0
    %140 = vmatpush1.bf16.msra.mxu0 0
    %141 = vmatprep.subr.bf16.mxu0 0
    %142 = vmatpush1.bf16.msra.mxu0 0
    %143 = vmatprep.subr.bf16.mxu0 0
    %144 = vmatpush1.bf16.msra.mxu0 0
    %145 = vmatprep.subr.bf16.mxu0 0
    %146 = vmatpush1.bf16.msra.mxu0 0
    %147 = vmatprep.subr.bf16.mxu0 0
    %148 = vmatpush1.bf16.msra.mxu0 0
    %149 = vmatprep.subr.bf16.mxu0 0
    %150 = vmatpush1.bf16.msra.mxu0 0
    %151 = vmatprep.subr.bf16.mxu0 0
    %152 = vmatpush1.bf16.msra.mxu0 0
    %153 = vmatprep.subr.bf16.mxu0 0
    %154 = vmatpush1.bf16.msra.mxu0 0
    %155 = vmatprep.mubr.bf16.mxu0 0
    %156 = vmatmul.mubr.bf16.gmra.mrb[0].mxu0 %v73
    %v157 = vpop.f32.mrb[0].mxu0
    %v158 = vadd.f32 %v67, %v157
    %v159 = vpop.f32.mrb[0].mxu0
    %v160 = vpop.f32.mrb[0].mxu0
    %v161 = vadd.f32 %v67, %v160
    %v162 = vpop.f32.mrb[0].mxu0
    %163 = vdwg.mxu0
    %v164 = vunpack.c.l.bf16 %v44
    %v165 = vunpack.c.l.bf16 %v45
    %v166 = vadd.f32 %v158, %v164
    %v167 = vadd.f32 %v161, %v165
    %168 = vst [vmem:[#allocation7] sm:$0xff] %v166
    %169 = vst [vmem:[#allocation7 + $0x8] sm:$0xff] %v167
    // Predicated region
    $region22: #{tpu_custom_call.1} parent=1 // pred_check
      _
    $region23: #{tpu_custom_call.1} parent=1 // pred_check_branch
      %171 = sbr.rel (0) target = $region25
    $region24: #{tpu_custom_call.1} parent=1 // pred_region
      %s173 = ssub.s32 256, 256
      %174 = vsyncadd [#allocation4], %s173
      %s175 = sshll.u32 [#allocation7], 4
      %s176 = int_to_ptr.vmem [resolvable:$true] %s175
      %181 = dma.vmem_to_hbm [thread:$0]  %s176, 256, %s3, [#allocation4], 128, 128, 8
    $region25: #{tpu_custom_call.1} parent=1 // pred_fallthru
      _
    // Predicated region
    $region26: #{tpu_custom_call.1} parent=1 // pred_check
      _
    $region27: #{tpu_custom_call.1} parent=1 // pred_check_branch
      %183 = sbr.rel (0) target = $region29
    $region28: #{tpu_custom_call.1} parent=1 // pred_region
      %184 = dma.done [#allocation4], 256
    $region29: #{tpu_custom_call.1} parent=1 // pred_fallthru
      _
    %185 = vsyncpa [#allocation3], 1
    %186 = vsyncpa [#allocation6], 1
    %187 = vsyncpa [#allocation4], 1

</llo_original>
